<compile_context>
chip_gen: v5e
topology: v5e:2x2
jax: 0.10.0
libtpu: 0.0.40
codegen_flags: <defaults>
</compile_context>

<pallas_src>
import functools

import jax
import jax.numpy as jnp
from jax.experimental import pallas as pl
from jax.experimental.pallas import tpu as pltpu

_LANE = 128
_VMEM_LIMIT = 32 * 1024 * 1024  # explicit scoped-VMEM budget (safe on v5e/v6e/v7x)


def _round_up(x, m):
    return ((x + m - 1) // m) * m


def _choose_m_tile(m, max_tile=512, align=16):
    """(tile, padded_m) for the M/sublane dim; align=16 for bf16 sublane packing."""
    if m <= max_tile:
        t = _round_up(m, align)
        return t, t
    for cand in range(max_tile, align - 1, -align):
        if m % cand == 0:
            return cand, m
    return max_tile, _round_up(m, max_tile)


def _largest_div_tile(dim, max_tile, align=_LANE):
    """dim is a multiple of `align`; largest divisor <= max_tile that is a multiple of
    `align` (128 always divides, so no padding is ever needed here)."""
    if dim <= max_tile:
        return dim
    for cand in range(max_tile, align - 1, -align):
        if dim % cand == 0:
            return cand
    return align


# ----------------------------------------------------------------------------------
# Pallas kernel 1: K-tiled dense matmul + bias + activation.
#   out[i, j] = act( sum_k A[i, k] * B[k, j] + bias[j] )
# bf16 operands, f32 scratch accumulator, bf16 (or f32) output written once on the
# last K step (final accumulate merged into the epilogue).
# ----------------------------------------------------------------------------------
def _epilogue(r, bias_ref, o_ref, act):
    r = r + bias_ref[...]
    if act == "relu":
        r = jnp.maximum(r, 0.0)
    elif act == "sigmoid":
        # exact sigmoid (exp on the EUP); keeps output strictly in [0, 1]
        r = 1.0 / (1.0 + jnp.exp(-r))
    o_ref[...] = r.astype(o_ref.dtype)


def _mm_bias_act_kernel(a_ref, b_ref, bias_ref, o_ref, acc_ref, *, act, nk):
    part = jnp.dot(a_ref[...], b_ref[...], preferred_element_type=jnp.float32)
    if nk == 1:
        _epilogue(part, bias_ref, o_ref, act)
        return

    k = pl.program_id(2)

    @pl.when(k == 0)
    def _():
        acc_ref[...] = part

    @pl.when(jnp.logical_and(k > 0, k < nk - 1))
    def _():
        acc_ref[...] += part

    @pl.when(k == nk - 1)
    def _():
        _epilogue(acc_ref[...] + part, bias_ref, o_ref, act)


def matmul_bias_act(a, wm, bias, act="none", out_dtype=jnp.bfloat16):
    """act(a @ wm + bias).
    a:    (M, K) any float dtype (cast to bf16; K zero-padded up to Kp)
    wm:   (Kp, Np) bf16, pre-padded to multiples of 128 (done once in prepare_params)
    bias: (N,) f32 with N <= Np the logical output width.
    Returns (M, N) in `out_dtype`."""
    M, K = a.shape
    Kp, Np = wm.shape
    N = bias.shape[0]
    assert K <= Kp and N <= Np, ((M, K), (Kp, Np), N)

    tm, Mp = _choose_m_tile(M, 512, 16)
    tk = _largest_div_tile(Kp, 4096)     # big K tiles -> few grid steps, big weight DMAs
    tn = _largest_div_tile(Np, 1024)     # full-N tiles for every layer in this network
    nk = Kp // tk

    a = a.astype(jnp.bfloat16)
    if (Mp, Kp) != (M, K):
        a = jnp.pad(a, ((0, Mp - M), (0, Kp - K)))
    bias2 = jnp.pad(bias.astype(jnp.float32), (0, Np - N)).reshape(1, Np)

    grid = (Mp // tm, Np // tn, nk)
    out = pl.pallas_call(
        functools.partial(_mm_bias_act_kernel, act=act, nk=nk),
        out_shape=jax.ShapeDtypeStruct((Mp, Np), out_dtype),
        grid_spec=pltpu.PrefetchScalarGridSpec(
            num_scalar_prefetch=0,
            grid=grid,
            in_specs=[
                pl.BlockSpec((tm, tk), lambda i, j, k: (i, k)),
                pl.BlockSpec((tk, tn), lambda i, j, k: (k, j)),
                pl.BlockSpec((1, tn), lambda i, j, k: (0, j)),
            ],
            out_specs=pl.BlockSpec((tm, tn), lambda i, j, k: (i, j)),
            scratch_shapes=[pltpu.VMEM((tm, tn), jnp.float32)],
        ),
        compiler_params=pltpu.CompilerParams(
            dimension_semantics=("parallel", "parallel", "arbitrary"),
            vmem_limit_bytes=_VMEM_LIMIT,
        ),
        cost_estimate=pl.CostEstimate(
            flops=2 * Mp * Kp * Np,
            transcendentals=Mp * Np if act == "sigmoid" else 0,
            bytes_accessed=(Mp * Kp + Kp * Np) * 2
            + Mp * Np * jnp.dtype(out_dtype).itemsize
            + Np * 4,
        ),
    )(a, wm, bias2)
    return out[:M, :N]


# ----------------------------------------------------------------------------------
# Pallas kernel 2: "super-group" batched matmul for the grouped 3x3 convs.
# Groups are packed into 128-output-channel super-groups (block-diagonal 128x128 weight
# blocks per 3x3 tap), so every matmul is lane-dense and the output channel layout is
# identical to the activation layout (no transposes on either side).
#   taps: (9, M, C) bf16,   wsg: (S, 9, 128, 128) bf16,   bsg: (S, 1, 128) f32
#   out : (M, C) bf16   where C = S * 128
# ----------------------------------------------------------------------------------
def _sg_mm_kernel(t_ref, w_ref, b_ref, o_ref, *, act):
    acc = jnp.dot(t_ref[0], w_ref[0, 0], preferred_element_type=jnp.float32)
    for t in range(1, t_ref.shape[0]):
        acc = acc + jnp.dot(t_ref[t], w_ref[0, t], preferred_element_type=jnp.float32)
    r = acc + b_ref[0]
    if act == "relu":
        r = jnp.maximum(r, 0.0)
    o_ref[...] = r.astype(o_ref.dtype)


def supergroup_conv_matmul(taps, wsg, bsg, act, out_dtype=jnp.bfloat16):
    T, m, C = taps.shape
    S = wsg.shape[0]
    assert C == S * _LANE, (taps.shape, wsg.shape)

    tm, Mp = _choose_m_tile(m, 256, 16)
    taps = taps.astype(jnp.bfloat16)
    if Mp != m:
        taps = jnp.pad(taps, ((0, 0), (0, Mp - m), (0, 0)))

    grid = (S, Mp // tm)
    out = pl.pallas_call(
        functools.partial(_sg_mm_kernel, act=act),
        out_shape=jax.ShapeDtypeStruct((Mp, C), out_dtype),
        grid_spec=pltpu.PrefetchScalarGridSpec(
            num_scalar_prefetch=0,
            grid=grid,
            in_specs=[
                pl.BlockSpec((T, tm, _LANE), lambda s, i: (0, i, s)),
                pl.BlockSpec((1, T, _LANE, _LANE), lambda s, i: (s, 0, 0, 0)),
                pl.BlockSpec((1, 1, _LANE), lambda s, i: (s, 0, 0)),
            ],
            out_specs=pl.BlockSpec((tm, _LANE), lambda s, i: (i, s)),
        ),
        compiler_params=pltpu.CompilerParams(
            dimension_semantics=("parallel", "parallel"),
            vmem_limit_bytes=_VMEM_LIMIT,
        ),
        cost_estimate=pl.CostEstimate(
            flops=2 * S * Mp * (T * _LANE) * _LANE,
            transcendentals=0,
            bytes_accessed=T * Mp * C * 2
            + S * T * _LANE * _LANE * 2
            + Mp * C * jnp.dtype(out_dtype).itemsize,
        ),
    )(taps, wsg, bsg)
    if Mp != m:
        out = out[:m]
    return out


# ----------------------------------------------------------------------------------
# im2col + conv / deconv glue (plain JAX; matmuls in Pallas)
# ----------------------------------------------------------------------------------
def _conv_taps(x, kh, kw, stride, pad):
    if pad:
        x = jnp.pad(x, ((0, 0), (pad, pad), (pad, pad), (0, 0)))
    n, hp, wp, _ = x.shape
    ho = (hp - kh) // stride + 1
    wo = (wp - kw) // stride + 1
    taps = [x[:, i:i + stride * ho:stride, j:j + stride * wo:stride, :]
            for i in range(kh) for j in range(kw)]
    return taps, (n, ho, wo)


def im2col(x, kh, kw, stride, pad):
    """(N,H,W,C) -> ((N*Ho*Wo, kh*kw*C) with (i,j,c) feature order, (N,Ho,Wo))."""
    taps, (n, ho, wo) = _conv_taps(x, kh, kw, stride, pad)
    cols = jnp.concatenate(taps, axis=-1).reshape(n * ho * wo, kh * kw * x.shape[-1])
    return cols, (n, ho, wo)


def im2col_taps3x3(x, stride):
    """(N,H,W,C) -> ((9, N*Ho*Wo, C) tap-leading layout for grouped convs, (N,Ho,Wo))."""
    taps, (n, ho, wo) = _conv_taps(x, 3, 3, stride, 1)
    t = jnp.stack(taps, axis=0).reshape(9, n * ho * wo, x.shape[-1])
    return t, (n, ho, wo)


def conv2d_p(x, p, kh, kw, stride, pad, act, out_dtype=jnp.bfloat16):
    """Conv with prepared weights p = {'wm': (Kp, Np) bf16, 'b': (Cout,) f32}."""
    cols, (n, ho, wo) = im2col(x, kh, kw, stride, pad)
    out = matmul_bias_act(cols, p["wm"], p["b"], act, out_dtype)
    return out.reshape(n, ho, wo, p["b"].shape[0])


def grouped_conv3x3_p(x, p, stride, act="relu"):
    """Grouped 3x3 conv, p = {'wsg': (S, 9, 128, 128), 'bsg': (S, 1, 128)}."""
    taps, (n, ho, wo) = im2col_taps3x3(x, stride)
    out = supergroup_conv_matmul(taps, p["wsg"], p["bsg"], act)
    c = p["wsg"].shape[0] * _LANE
    return out.reshape(n, ho, wo, c)


def deconv2x2_p(x, p):
    """ConvTranspose2d(k=2, s=2) with prepared p = {'wm': (Kp, Np), 'b': (4*Cout,)}."""
    n, h, w, cin = x.shape
    cout = p["b"].shape[0] // 4
    out = matmul_bias_act(x.reshape(n * h * w, cin), p["wm"], p["b"], "none")
    out = out.reshape(n, h, w, 2, 2, cout)
    out = out.transpose(0, 1, 3, 2, 4, 5).reshape(n, 2 * h, 2 * w, cout)
    return out


# ----------------------------------------------------------------------------------
# Raw parameter init (PyTorch layout, deterministic kaiming-style)
# ----------------------------------------------------------------------------------
class KeyGen:
    def __init__(self, seed):
        self.key = jax.random.PRNGKey(seed)

    def __call__(self):
        self.key, k = jax.random.split(self.key)
        return k


def init_conv(kg, cout, cin, kh, kw, bias):
    fan_in = cin * kh * kw
    w = jax.random.normal(kg(), (cout, cin, kh, kw), jnp.float32) * (2.0 / fan_in) ** 0.5
    b = jax.random.normal(kg(), (cout,), jnp.float32) * 0.01 if bias else None
    return {"w": w, "b": b}


def init_bn(c):
    return {
        "gamma": jnp.ones((c,), jnp.float32),
        "beta": jnp.zeros((c,), jnp.float32),
        "mean": jnp.zeros((c,), jnp.float32),
        "var": jnp.ones((c,), jnp.float32),
    }


def init_bottleneck(kg, inplanes, planes, stride, groups=32, base_width=4):
    width = int(planes * (base_width / 64.0)) * groups
    p = {
        "conv1": init_conv(kg, width, inplanes, 1, 1, False),
        "bn1": init_bn(width),
        "bn2": init_bn(width),
        "conv3": init_conv(kg, planes * 4, width, 1, 1, False),
        "bn3": init_bn(planes * 4),
    }
    fan_in = (width // groups) * 9
    p["conv2"] = {
        "w": jax.random.normal(kg(), (width, width // groups, 3, 3), jnp.float32)
        * (2.0 / fan_in) ** 0.5,
        "b": None,
    }
    if stride != 1 or inplanes != planes * 4:
        p["down_conv"] = init_conv(kg, planes * 4, inplanes, 1, 1, False)
        p["down_bn"] = init_bn(planes * 4)
    return p


def init_decoder(kg, cin, cout):
    w = jax.random.normal(kg(), (cin, cout, 2, 2), jnp.float32) * (1.0 / (cin * 4)) ** 0.5
    b = jax.random.normal(kg(), (cout,), jnp.float32) * 0.01
    return {
        "deconv": {"w": w, "b": b},
        "conv1": init_conv(kg, cout, cout, 3, 3, True),
        "conv2": init_conv(kg, cout, cout, 3, 3, True),
    }


def init_plumenet(seed, in_channels, n_classes):
    kg = KeyGen(seed)

    def make_layer(inplanes, planes, blocks, stride):
        ps, inp = [], inplanes
        for b in range(blocks):
            ps.append(init_bottleneck(kg, inp, planes, stride if b == 0 else 1))
            inp = planes * 4
        return ps

    P = {}
    P["stem_conv"] = init_conv(kg, 64, in_channels, 7, 7, True)  # replaces resnext conv1
    P["stem_bn"] = init_bn(64)
    P["layer1"] = make_layer(64, 64, 3, 1)
    P["layer2"] = make_layer(256, 128, 4, 2)
    P["layer3"] = make_layer(512, 256, 6, 2)
    P["layer4"] = make_layer(1024, 512, 3, 2)
    P["neck1"] = init_conv(kg, 1024, 2048, 3, 3, True)
    P["neck2"] = init_conv(kg, 512, 1024, 3, 3, True)
    P["decoder4"] = init_decoder(kg, 2560, 512)
    P["decoder3"] = init_decoder(kg, 1536, 256)
    P["decoder2"] = init_decoder(kg, 768, 128)
    P["decoder1"] = init_decoder(kg, 384, 64)
    P["last_conv0"] = init_conv(kg, 64, 64, 3, 3, True)
    P["last_conv1"] = init_conv(kg, n_classes, 64, 3, 3, True)
    return P


# ----------------------------------------------------------------------------------
# One-time inference prep: fold BN (eval mode), reshape/pad to matmul layout, cast to
# bf16, fuse conv1+downsample, build super-group grouped-conv weights.
# ----------------------------------------------------------------------------------
def _fold_bn(w, b, bn, eps=1e-5):
    scale = bn["gamma"] / jnp.sqrt(bn["var"] + eps)
    w2 = w * scale[:, None, None, None]
    b0 = b if b is not None else jnp.zeros((w.shape[0],), jnp.float32)
    b2 = (b0 - bn["mean"]) * scale + bn["beta"]
    return w2, b2


def _prep_conv(w, b):
    cout, cin, kh, kw = w.shape
    k = kh * kw * cin
    kp = _round_up(k, _LANE)
    npad = _round_up(cout, _LANE)
    wm = jnp.transpose(w, (2, 3, 1, 0)).reshape(k, cout)          # (i, j, c) feature order
    wm = jnp.pad(wm, ((0, kp - k), (0, npad - cout))).astype(jnp.bfloat16)
    if b is None:
        b = jnp.zeros((cout,), jnp.float32)
    return {"wm": wm, "b": b.astype(jnp.float32)}


def _prep_conv_bn(convp, bnp):
    w, b = _fold_bn(convp["w"], convp["b"], bnp)
    return _prep_conv(w, b)


def _prep_grouped_conv_bn(convp, bnp, groups):
    w, b = _fold_bn(convp["w"], convp["b"], bnp)
    cout, cpg, kh, kw = w.shape
    assert cout % _LANE == 0 and _LANE % cpg == 0 and cout // groups == cpg
    S = cout // _LANE            # super-groups of 128 output channels
    gps = _LANE // cpg           # original groups packed per super-group
    # [co, ci_l, ki, kj] with co = s*128 + gl*cpg + co_l
    wr = w.reshape(S, gps, cpg, cpg, kh, kw)                       # [s, gl, co_l, ci_l, ki, kj]
    wr = jnp.transpose(wr, (0, 4, 5, 1, 3, 2)).reshape(S, kh * kw, gps, cpg, cpg)
    eye = jnp.eye(gps, dtype=w.dtype)
    # block-diagonal 128x128 per (super-group, tap): rows = input chan, cols = output chan
    full = wr[:, :, :, :, None, :] * eye[None, None, :, None, :, None]
    wsg = full.reshape(S, kh * kw, _LANE, _LANE).astype(jnp.bfloat16)
    bsg = b.reshape(S, 1, _LANE).astype(jnp.float32)
    return {"wsg": wsg, "bsg": bsg}


def _prep_deconv(w, b):
    cin, cout = w.shape[0], w.shape[1]
    wm = jnp.transpose(w, (0, 2, 3, 1)).reshape(cin, 4 * cout)
    kp = _round_up(cin, _LANE)
    npad = _round_up(4 * cout, _LANE)
    wm = jnp.pad(wm, ((0, kp - cin), (0, npad - 4 * cout))).astype(jnp.bfloat16)
    return {"wm": wm, "b": jnp.tile(b, 4).astype(jnp.float32)}


def _prep_bottleneck(p, groups=32):
    q = {
        "c2": _prep_grouped_conv_bn(p["conv2"], p["bn2"], groups),
        "c3": _prep_conv_bn(p["conv3"], p["bn3"]),
    }
    if "down_conv" in p:
        # Fuse conv1 (1x1) and downsample (1x1) into one matmul over the shared input.
        w1, b1 = _fold_bn(p["conv1"]["w"], p["conv1"]["b"], p["bn1"])
        wd, bd = _fold_bn(p["down_conv"]["w"], p["down_conv"]["b"], p["down_bn"])
        q["c1down"] = _prep_conv(jnp.concatenate([w1, wd], axis=0),
                                 jnp.concatenate([b1, bd], axis=0))
    else:
        q["c1"] = _prep_conv_bn(p["conv1"], p["bn1"])
    return q


def prepare_params(raw):
    def prep_dec(d):
        return {
            "deconv": _prep_deconv(d["deconv"]["w"], d["deconv"]["b"]),
            "conv1": _prep_conv(d["conv1"]["w"], d["conv1"]["b"]),
            "conv2": _prep_conv(d["conv2"]["w"], d["conv2"]["b"]),
        }

    return {
        "stem": _prep_conv_bn(raw["stem_conv"], raw["stem_bn"]),
        "layer1": [_prep_bottleneck(b) for b in raw["layer1"]],
        "layer2": [_prep_bottleneck(b) for b in raw["layer2"]],
        "layer3": [_prep_bottleneck(b) for b in raw["layer3"]],
        "layer4": [_prep_bottleneck(b) for b in raw["layer4"]],
        "neck1": _prep_conv(raw["neck1"]["w"], raw["neck1"]["b"]),
        "neck2": _prep_conv(raw["neck2"]["w"], raw["neck2"]["b"]),
        "decoder4": prep_dec(raw["decoder4"]),
        "decoder3": prep_dec(raw["decoder3"]),
        "decoder2": prep_dec(raw["decoder2"]),
        "decoder1": prep_dec(raw["decoder1"]),
        "last_conv0": _prep_conv(raw["last_conv0"]["w"], raw["last_conv0"]["b"]),
        "last_conv1": _prep_conv(raw["last_conv1"]["w"], raw["last_conv1"]["b"]),
    }


# ----------------------------------------------------------------------------------
# Forward pass
# ----------------------------------------------------------------------------------
def bottleneck_fwd(x, p, stride):
    width = p["c2"]["wsg"].shape[0] * _LANE
    if "c1down" in p:
        # One matmul over the shared input for conv1 + downsample; relu only on the
        # conv1 half, strided selection recovers the stride-2 downsample output.
        fused = conv2d_p(x, p["c1down"], 1, 1, 1, 0, "none")
        out = jnp.maximum(fused[..., :width], 0.0)
        identity = fused[..., width:]
        if stride == 2:
            identity = identity[:, ::2, ::2, :]
    else:
        identity = x
        out = conv2d_p(x, p["c1"], 1, 1, 1, 0, "relu")
    out = grouped_conv3x3_p(out, p["c2"], stride, "relu")
    out = conv2d_p(out, p["c3"], 1, 1, 1, 0, "none")
    return jnp.maximum(out + identity, 0.0)


def layer_fwd(x, blocks, first_stride):
    for i, bp in enumerate(blocks):
        x = bottleneck_fwd(x, bp, first_stride if i == 0 else 1)
    return x


def decoder_fwd(x, p):
    x = deconv2x2_p(x, p["deconv"])
    x = conv2d_p(x, p["conv1"], 3, 3, 1, 1, "relu")
    x = conv2d_p(x, p["conv2"], 3, 3, 1, 1, "relu")
    return x


def plumenet_fwd(params, x_nchw):
    x = jnp.transpose(x_nchw, (0, 2, 3, 1))  # NCHW -> NHWC

    # encoder0: conv7x7 s2 p3 (bias) + BN + ReLU (resnext maxpool is skipped, exactly
    # as in the PyTorch module's base_layers slicing).
    x = conv2d_p(x, params["stem"], 7, 7, 2, 3, "relu")
    e1 = layer_fwd(x, params["layer1"], 1)
    e2 = layer_fwd(e1, params["layer2"], 2)
    e3 = layer_fwd(e2, params["layer3"], 2)
    e4 = layer_fwd(e3, params["layer4"], 2)

    n1 = conv2d_p(e4, params["neck1"], 3, 3, 1, 1, "relu")
    n2 = conv2d_p(n1, params["neck2"], 3, 3, 1, 1, "relu")

    d4 = decoder_fwd(jnp.concatenate([n2, e4], axis=-1), params["decoder4"])
    d3 = decoder_fwd(jnp.concatenate([d4, e3], axis=-1), params["decoder3"])
    d2 = decoder_fwd(jnp.concatenate([d3, e2], axis=-1), params["decoder2"])
    d1 = decoder_fwd(jnp.concatenate([d2, e1], axis=-1), params["decoder1"])

    out = conv2d_p(d1, params["last_conv0"], 3, 3, 1, 1, "relu")
    # final layer: f32 output so the sigmoid probabilities are not bf16-quantized
    out = conv2d_p(out, params["last_conv1"], 3, 3, 1, 1, "sigmoid", out_dtype=jnp.float32)
    return jnp.transpose(out, (0, 3, 1, 2))  # back to NCHW


# ----------------------------------------------------------------------------------
# Self-test of the two Pallas conv paths against lax.conv (bf16-rounded f32 reference)
# ----------------------------------------------------------------------------------
def _bf16_round(a):
    return a.astype(jnp.bfloat16).astype(jnp.float32)


def _self_test():
    k1, k2, k3, k4, k5 = jax.random.split(jax.random.PRNGKey(42), 5)

    # dense conv path (3x3, pad 1)
    x = jax.random.normal(k1, (1, 8, 8, 16), jnp.float32)
    w = jax.random.normal(k2, (24, 16, 3, 3), jnp.float32) * 0.2
    b = jax.random.normal(k3, (24,), jnp.float32) * 0.1
    got = conv2d_p(x, _prep_conv(w, b), 3, 3, 1, 1, "none").astype(jnp.float32)
    ref = jax.lax.conv_general_dilated(
        _bf16_round(x), jnp.transpose(_bf16_round(w), (2, 3, 1, 0)), (1, 1),
        ((1, 1), (1, 1)), dimension_numbers=("NHWC", "HWIO", "NHWC")) + b
    err = jnp.max(jnp.abs(got - ref)) / (jnp.max(jnp.abs(ref)) + 1e-6)
    assert float(err) < 1e-2, f"dense conv mismatch: {float(err)}"

    # grouped 3x3 conv (super-group path), stride 2
    G, cpg = 32, 8
    C = G * cpg
    xg = jax.random.normal(k4, (1, 8, 8, C), jnp.float32)
    wg = jax.random.normal(k5, (C, cpg, 3, 3), jnp.float32) * 0.2
    pg = _prep_grouped_conv_bn({"w": wg, "b": None}, init_bn(C), G)
    gotg = grouped_conv3x3_p(xg, pg, 2, "none").astype(jnp.float32)
    refg = jax.lax.conv_general_dilated(
        _bf16_round(xg), jnp.transpose(_bf16_round(wg), (2, 3, 1, 0)), (2, 2),
        ((1, 1), (1, 1)), feature_group_count=G,
        dimension_numbers=("NHWC", "HWIO", "NHWC"))
    errg = jnp.max(jnp.abs(gotg - refg)) / (jnp.max(jnp.abs(refg)) + 1e-6)
    assert float(errg) < 1e-2, f"grouped conv mismatch: {float(errg)}"


# ----------------------------------------------------------------------------------
if __name__ == "__main__":
    IN_CHANNELS = 3
    N_CLASSES = 1
    B, H, W = 2, 16, 16  # spatial must be divisible by 16 (4 stride-2 stages)

    _self_test()

    raw_params = init_plumenet(seed=0, in_channels=IN_CHANNELS, n_classes=N_CLASSES)
    params = prepare_params(raw_params)  # BN folded + padded bf16 matmul layout, once
    x = jax.random.normal(jax.random.PRNGKey(0), (B, IN_CHANNELS, H, W), jnp.float32)

    fwd = jax.jit(plumenet_fwd)
    out = jax.block_until_ready(fwd(params, x))

    assert out.shape == (B, N_CLASSES, H, W), out.shape
    assert out.dtype == jnp.float32
    assert bool(jnp.all(jnp.isfinite(out)))
    assert bool(jnp.all((out >= 0.0) & (out <= 1.0)))  # sigmoid output range
    print("KERNEL_OK")
</pallas_src>

<mosaic_0001>
module attributes {stable_mosaic.version = 11 : i64} {
  func.func @_mm_bias_act_kernel(%arg0: i32, %arg1: i32, %arg2: i32, %arg3: memref<64x256xbf16, #tpu.memory_space<vmem>>, %arg4: memref<256x128xbf16, #tpu.memory_space<vmem>>, %arg5: memref<1x128xf32, #tpu.memory_space<vmem>>, %arg6: memref<64x128xbf16, #tpu.memory_space<vmem>>, %arg7: memref<64x128xf32, #tpu.memory_space<vmem>>) attributes {dimension_semantics = [#tpu.dimension_semantics<parallel>, #tpu.dimension_semantics<parallel>, #tpu.dimension_semantics<arbitrary>], iteration_bounds = array<i64: 1, 1, 1>, scalar_prefetch = 0 : i64, scratch_operands = 1 : i64, tpu.core_type = #tpu.core_type<tc>, window_params = [{transform_indices = @transform_0, window_bounds = array<i64: 64, 256>}, {transform_indices = @transform_1, window_bounds = array<i64: 256, 128>}, {transform_indices = @transform_2, window_bounds = array<i64: 1, 128>}, {transform_indices = @transform_3, window_bounds = array<i64: 64, 128>}]} {
    %c0 = arith.constant 0 : index
    %c0_0 = arith.constant 0 : index
    %0 = vector.load %arg3[%c0, %c0_0] : memref<64x256xbf16, #tpu.memory_space<vmem>>, vector<64x256xbf16>
    %c0_1 = arith.constant 0 : index
    %c0_2 = arith.constant 0 : index
    %1 = vector.load %arg4[%c0_1, %c0_2] : memref<256x128xbf16, #tpu.memory_space<vmem>>, vector<256x128xbf16>
    %cst = arith.constant dense<0.000000e+00> : vector<64x128xf32>
    %2 = tpu.matmul %0, %1, %cst {dimension_numbers = #tpu.dot_dimension_numbers<[1], [0], [0], [1], [0, 0, 1, 1], [], []>} : vector<64x256xbf16>, vector<256x128xbf16>, vector<64x128xf32> -> vector<64x128xf32>
    %c0_3 = arith.constant 0 : index
    %c0_4 = arith.constant 0 : index
    %3 = vector.load %arg5[%c0_3, %c0_4] : memref<1x128xf32, #tpu.memory_space<vmem>>, vector<1x128xf32>
    %4 = vector.broadcast %3 : vector<1x128xf32> to vector<64x128xf32>
    %5 = arith.addf %2, %4 : vector<64x128xf32>
    %6 = arith.truncf %5 : vector<64x128xf32> to vector<64x128xbf16>
    %c0_5 = arith.constant 0 : index
    %c0_6 = arith.constant 0 : index
    %7 = vector.load %arg6[%c0_5, %c0_6] : memref<64x128xbf16, #tpu.memory_space<vmem>>, vector<64x128xbf16>
    tpu.vector_store %arg6[%c0_5, %c0_6], %6 {strides = array<i32>} : memref<64x128xbf16, #tpu.memory_space<vmem>>, vector<64x128xbf16>,
    return
  }
  func.func @transform_0(%arg0: i32, %arg1: i32, %arg2: i32) -> (i32, i32) {
    %c0_i32 = arith.constant 0 : i32
    return %arg0, %arg2 : i32, i32
  }
  func.func @transform_1(%arg0: i32, %arg1: i32, %arg2: i32) -> (i32, i32) {
    %c0_i32 = arith.constant 0 : i32
    return %arg2, %arg1 : i32, i32
  }
  func.func @transform_2(%arg0: i32, %arg1: i32, %arg2: i32) -> (i32, i32) {
    %c0_i32 = arith.constant 0 : i32
    %c0_i32_0 = arith.constant 0 : i32
    return %c0_i32, %arg1 : i32, i32
  }
  func.func @transform_3(%arg0: i32, %arg1: i32, %arg2: i32) -> (i32, i32) {
    %c0_i32 = arith.constant 0 : i32
    return %arg0, %arg1 : i32, i32
  }
}

</mosaic_0001>

<llo_original>
// kernel: tpu_custom_call.1
$region0: #{tpu_custom_call.1}
  #allocation0 [shape = 'u32[]', space=smem, size = 0x4, offset = 0x4, fixed_abs, tag = 'smem constant byte address 0x4 - core index']
  #allocation1 [shape = 'u32[72,128]{1,0:T(1,128)}', space=vmem, size = 0x9000, scoped, tag = 'internal scratch']
  #allocation2 [shape = 'f32[64,128]{1,0:T(8,128)}', space=vmem, size = 0x8000, scoped, tag = 'scratch operand']
  %s0 = inlined_call_operand.hbm [shape: bf16[64,256], index: 0, kind: input, shape index: {}]
  %s1 = inlined_call_operand.hbm [shape: bf16[256,128], index: 1, kind: input, shape index: {}]
  %s2 = inlined_call_operand.vmem [shape: f32[1,128], index: 2, kind: input, shape index: {}]
  %s3 = inlined_call_operand.hbm [shape: bf16[64,128], index: 3, kind: output, shape index: {}]
  %s4 = sld [smem:[#allocation0]]
  $region30: #{tpu_custom_call.1} parent=0
    _
  %s6 = ssub.s32 1, %s4
  %s7 = scalar_select 0, %s6, %s4
  $region1: #{tpu_custom_call.1} parent=0
    #allocation3 [shape = 'u8[32768]{0}', space=vmem, size = 0x8000, scoped, tag = 'input window, operand 0, single buffered']
    #allocation4 [shape = 's32[1]{0}', space=sflag, size = 0x4, scoped, tag = 'scoped memory for tpu_custom_call.1']
    #allocation5 [shape = 's32[1]{0}', space=sflag, size = 0x4, scoped, tag = 'scoped memory for tpu_custom_call.1']
    #allocation6 [shape = 'u8[65536]{0}', space=vmem, size = 0x10000, scoped, tag = 'input window, operand 1, single buffered']
    #allocation7 [shape = 's32[1]{0}', space=sflag, size = 0x4, scoped, tag = 'scoped memory for tpu_custom_call.1']
    #allocation8 [shape = 'u8[16384]{0}', space=vmem, size = 0x4000, scoped, tag = 'output window, operand 0, single buffered']
    %8 = vsyncpa [#allocation4], 0
    %9 = vsyncpa [#allocation7], 0
    %10 = vsyncpa [#allocation5], 0
    // Predicated region
    $region2: #{tpu_custom_call.1} parent=1 // pred_check
      _
    $region3: #{tpu_custom_call.1} parent=1 // pred_check_branch
      %12 = sbr.rel (0) target = $region5
    $region4: #{tpu_custom_call.1} parent=1 // pred_region
      %14 = vsyncadd [#allocation4], 0
      %s15 = sshll.u32 %s0, 4
      %s16 = int_to_ptr.hbm [resolvable:$true] %s15
      %s17 = sshll.u32 [#allocation3], 4
      %s18 = int_to_ptr.vmem [resolvable:$true] %s17
      %23 = dma.hbm_to_vmem [thread:$0]  %s16, 1024, %s18, [#allocation4], 128, 128, 8
    $region5: #{tpu_custom_call.1} parent=1 // pred_fallthru
      _
    // Predicated region
    $region6: #{tpu_custom_call.1} parent=1 // pred_check
      _
    $region7: #{tpu_custom_call.1} parent=1 // pred_check_branch
      %25 = sbr.rel (0) target = $region9
    $region8: #{tpu_custom_call.1} parent=1 // pred_region
      %27 = vsyncadd [#allocation7], 0
      %s28 = sshll.u32 %s1, 4
      %s29 = int_to_ptr.hbm [resolvable:$true] %s28
      %s30 = sshll.u32 [#allocation6], 4
      %s31 = int_to_ptr.vmem [resolvable:$true] %s30
      %36 = dma.hbm_to_vmem [thread:$0]  %s29, 2048, %s31, [#allocation7], 64, 64, 4
    $region9: #{tpu_custom_call.1} parent=1 // pred_fallthru
      _
    // Predicated region
    $region10: #{tpu_custom_call.1} parent=1 // pred_check
      _
    $region11: #{tpu_custom_call.1} parent=1 // pred_check_branch
      %38 = sbr.rel (0) target = $region13
    $region12: #{tpu_custom_call.1} parent=1 // pred_region
      _
    $region13: #{tpu_custom_call.1} parent=1 // pred_fallthru
      _
    // Predicated region
    $region14: #{tpu_custom_call.1} parent=1 // pred_check
      _
    $region15: #{tpu_custom_call.1} parent=1 // pred_check_branch
      %40 = sbr.rel (0) target = $region17
    $region16: #{tpu_custom_call.1} parent=1 // pred_region
      %42 = dma.done [#allocation4], 1024
    $region17: #{tpu_custom_call.1} parent=1 // pred_fallthru
      _
    // Predicated region
    $region18: #{tpu_custom_call.1} parent=1 // pred_check
      _
    $region19: #{tpu_custom_call.1} parent=1 // pred_check_branch
      %44 = sbr.rel (0) target = $region21
    $region20: #{tpu_custom_call.1} parent=1 // pred_region
      %46 = dma.done [#allocation7], 2048
    $region21: #{tpu_custom_call.1} parent=1 // pred_fallthru
      _
    %v47 = vld [vmem:[#allocation3] sm:$0xff]
    %v48 = vld [vmem:[#allocation3 + $0x8] sm:$0xff]
    %v49 = vld [vmem:[#allocation3 + $0x10] sm:$0xff]
    %v50 = vld [vmem:[#allocation3 + $0x18] sm:$0xff]
    %v51 = vld [vmem:[#allocation3 + $0x20] sm:$0xff]
    %v52 = vld [vmem:[#allocation3 + $0x28] sm:$0xff]
    %v53 = vld [vmem:[#allocation3 + $0x30] sm:$0xff]
    %v54 = vld [vmem:[#allocation3 + $0x38] sm:$0xff]
    %v55 = vld [vmem:[#allocation6] sm:$0xf]
    %v56 = vld [vmem:[#allocation6 + $0x4] sm:$0xf]
    %v57 = vld [vmem:[#allocation6 + $0x8] sm:$0xf]
    %v58 = vld [vmem:[#allocation6 + $0xc] sm:$0xf]
    %v59 = vld [vmem:[#allocation6 + $0x10] sm:$0xf]
    %v60 = vld [vmem:[#allocation6 + $0x14] sm:$0xf]
    %v61 = vld [vmem:[#allocation6 + $0x18] sm:$0xf]
    %v62 = vld [vmem:[#allocation6 + $0x1c] sm:$0xf]
    %v63 = vld [vmem:[#allocation6 + $0x20] sm:$0xf]
    %v64 = vld [vmem:[#allocation6 + $0x24] sm:$0xf]
    %v65 = vld [vmem:[#allocation6 + $0x28] sm:$0xf]
    %v66 = vld [vmem:[#allocation6 + $0x2c] sm:$0xf]
    %v67 = vld [vmem:[#allocation6 + $0x30] sm:$0xf]
    %v68 = vld [vmem:[#allocation6 + $0x34] sm:$0xf]
    %v69 = vld [vmem:[#allocation6 + $0x38] sm:$0xf]
    %v70 = vld [vmem:[#allocation6 + $0x3c] sm:$0xf]
    %v71 = vld [vmem:[#allocation6 + $0x40] sm:$0xf]
    %v72 = vld [vmem:[#allocation6 + $0x44] sm:$0xf]
    %v73 = vld [vmem:[#allocation6 + $0x48] sm:$0xf]
    %v74 = vld [vmem:[#allocation6 + $0x4c] sm:$0xf]
    %v75 = vld [vmem:[#allocation6 + $0x50] sm:$0xf]
    %v76 = vld [vmem:[#allocation6 + $0x54] sm:$0xf]
    %v77 = vld [vmem:[#allocation6 + $0x58] sm:$0xf]
    %v78 = vld [vmem:[#allocation6 + $0x5c] sm:$0xf]
    %v79 = vld [vmem:[#allocation6 + $0x60] sm:$0xf]
    %v80 = vld [vmem:[#allocation6 + $0x64] sm:$0xf]
    %v81 = vld [vmem:[#allocation6 + $0x68] sm:$0xf]
    %v82 = vld [vmem:[#allocation6 + $0x6c] sm:$0xf]
    %v83 = vld [vmem:[#allocation6 + $0x70] sm:$0xf]
    %v84 = vld [vmem:[#allocation6 + $0x74] sm:$0xf]
    %v85 = vld [vmem:[#allocation6 + $0x78] sm:$0xf]
    %v86 = vld [vmem:[#allocation6 + $0x7c] sm:$0xf]
    %v87 = vld [vmem:[%s2] sm:$0x1]
    %v89 = vperm.slane %v87, 0
    %v99 = vunpack.c.l.b16 %v47
    %v100 = vunpack.c.h.b16 %v47
    %v101 = vunpack.c.l.b16 %v48
    %v102 = vunpack.c.h.b16 %v48
    %v103 = vunpack.c.l.b16 %v49
    %v104 = vunpack.c.h.b16 %v49
    %v105 = vunpack.c.l.b16 %v50
    %v106 = vunpack.c.h.b16 %v50
    %v107 = vunpack.c.l.b16 %v51
    %v108 = vunpack.c.h.b16 %v51
    %v109 = vunpack.c.l.b16 %v52
    %v110 = vunpack.c.h.b16 %v52
    %v111 = vunpack.c.l.b16 %v53
    %v112 = vunpack.c.h.b16 %v53
    %v113 = vunpack.c.l.b16 %v54
    %v114 = vunpack.c.h.b16 %v54
    %v115 = vpack.c.b16 %v101, %v99
    %v116 = vpack.c.b16 %v102, %v100
    %v117 = vpack.c.b16 %v105, %v103
    %v118 = vpack.c.b16 %v106, %v104
    %v119 = vpack.c.b16 %v109, %v107
    %v120 = vpack.c.b16 %v110, %v108
    %v121 = vpack.c.b16 %v113, %v111
    %v122 = vpack.c.b16 %v114, %v112
    %v163 = vunpack.c.l.b16 %v55
    %v164 = vunpack.c.l.b16 %v56
    %v165 = vunpack.c.l.b16 %v57
    %v166 = vunpack.c.l.b16 %v58
    %v167 = vunpack.c.l.b16 %v59
    %v168 = vunpack.c.l.b16 %v60
    %v169 = vunpack.c.l.b16 %v61
    %v170 = vunpack.c.l.b16 %v62
    %v171 = vunpack.c.l.b16 %v63
    %v172 = vunpack.c.l.b16 %v64
    %v173 = vunpack.c.l.b16 %v65
    %v174 = vunpack.c.l.b16 %v66
    %v175 = vunpack.c.l.b16 %v67
    %v176 = vunpack.c.l.b16 %v68
    %v177 = vunpack.c.l.b16 %v69
    %v178 = vunpack.c.l.b16 %v70
    %v179 = vunpack.c.l.b16 %v71
    %v180 = vunpack.c.l.b16 %v72
    %v181 = vunpack.c.l.b16 %v73
    %v182 = vunpack.c.l.b16 %v74
    %v183 = vunpack.c.l.b16 %v75
    %v184 = vunpack.c.l.b16 %v76
    %v185 = vunpack.c.l.b16 %v77
    %v186 = vunpack.c.l.b16 %v78
    %v187 = vunpack.c.l.b16 %v79
    %v188 = vunpack.c.l.b16 %v80
    %v189 = vunpack.c.l.b16 %v81
    %v190 = vunpack.c.l.b16 %v82
    %v191 = vunpack.c.l.b16 %v83
    %v192 = vunpack.c.l.b16 %v84
    %v193 = vunpack.c.l.b16 %v85
    %v194 = vunpack.c.l.b16 %v86
    %v195 = vpack.c.b16 %v164, %v163
    %v196 = vpack.c.b16 %v166, %v165
    %v197 = vpack.c.b16 %v168, %v167
    %v198 = vpack.c.b16 %v170, %v169
    %v199 = vpack.c.b16 %v172, %v171
    %v200 = vpack.c.b16 %v174, %v173
    %v201 = vpack.c.b16 %v176, %v175
    %v202 = vpack.c.b16 %v178, %v177
    %v203 = vpack.c.b16 %v180, %v179
    %v204 = vpack.c.b16 %v182, %v181
    %v205 = vpack.c.b16 %v184, %v183
    %v206 = vpack.c.b16 %v186, %v185
    %v207 = vpack.c.b16 %v188, %v187
    %v208 = vpack.c.b16 %v190, %v189
    %v209 = vpack.c.b16 %v192, %v191
    %v210 = vpack.c.b16 %v194, %v193
    %227 = vmatpush.bf16.msra.mxu0 %v202
    %228 = vmatpush.bf16.msra.mxu0 %v201
    %229 = vmatpush.bf16.msra.mxu0 %v200
    %230 = vmatpush.bf16.msra.mxu0 %v199
    %231 = vmatpush.bf16.msra.mxu0 %v198
    %232 = vmatpush.bf16.msra.mxu0 %v197
    %233 = vmatpush.bf16.msra.mxu0 %v196
    %234 = vmatpush.bf16.msra.mxu0 %v195
    %235 = vmatmul.bf16.gmra.mxu0 %v115
    %v236 = vpop.f32.mrf.mxu0
    %v237 = vadd.f32 %v89, %v236
    %v238 = vpop.f32.mrf.mxu0
    %v239 = vadd.f32 %v89, %v238
    %240 = vmatmul.bf16.gmra.mxu0 %v117
    %v241 = vpop.f32.mrf.mxu0
    %v242 = vadd.f32 %v89, %v241
    %v243 = vpop.f32.mrf.mxu0
    %v244 = vadd.f32 %v89, %v243
    %245 = vmatmul.bf16.gmra.mxu0 %v119
    %v246 = vpop.f32.mrf.mxu0
    %v247 = vadd.f32 %v89, %v246
    %v248 = vpop.f32.mrf.mxu0
    %v249 = vadd.f32 %v89, %v248
    %250 = vmatmul.bf16.gmra.mxu0 %v121
    %v251 = vpop.f32.mrf.mxu0
    %v252 = vadd.f32 %v89, %v251
    %v253 = vpop.f32.mrf.mxu0
    %v254 = vadd.f32 %v89, %v253
    %255 = vdwg.mxu0
    %256 = vmatpush.bf16.msra.mxu0 %v210
    %257 = vmatpush.bf16.msra.mxu0 %v209
    %258 = vmatpush.bf16.msra.mxu0 %v208
    %259 = vmatpush.bf16.msra.mxu0 %v207
    %260 = vmatpush.bf16.msra.mxu0 %v206
    %261 = vmatpush.bf16.msra.mxu0 %v205
    %262 = vmatpush.bf16.msra.mxu0 %v204
    %263 = vmatpush.bf16.msra.mxu0 %v203
    %264 = vmatmul.bf16.gmra.mxu0 %v116
    %v265 = vpop.f32.mrf.mxu0
    %v266 = vadd.f32 %v237, %v265
    %v267 = vpop.f32.mrf.mxu0
    %v268 = vadd.f32 %v239, %v267
    %269 = vmatmul.bf16.gmra.mxu0 %v118
    %v270 = vpop.f32.mrf.mxu0
    %v271 = vadd.f32 %v242, %v270
    %v272 = vpop.f32.mrf.mxu0
    %v273 = vadd.f32 %v244, %v272
    %274 = vmatmul.bf16.gmra.mxu0 %v120
    %v275 = vpop.f32.mrf.mxu0
    %v276 = vadd.f32 %v247, %v275
    %v277 = vpop.f32.mrf.mxu0
    %v278 = vadd.f32 %v249, %v277
    %279 = vmatmul.bf16.gmra.mxu0 %v122
    %v280 = vpop.f32.mrf.mxu0
    %v281 = vadd.f32 %v252, %v280
    %v282 = vpop.f32.mrf.mxu0
    %v283 = vadd.f32 %v254, %v282
    %284 = vdwg.mxu0
    %v285 = vpack.c.bf16 %v266, %v266
    %v286 = vpack.c.bf16 %v268, %v268
    %v287 = vpack.c.bf16 %v271, %v271
    %v288 = vpack.c.bf16 %v273, %v273
    %v289 = vpack.c.bf16 %v276, %v276
    %v290 = vpack.c.bf16 %v278, %v278
    %v291 = vpack.c.bf16 %v281, %v281
    %v292 = vpack.c.bf16 %v283, %v283
    %293 = vst [vmem:[#allocation8] sm:$0xf] %v285
    %294 = vst [vmem:[#allocation8 + $0x4] sm:$0xf] %v286
    %295 = vst [vmem:[#allocation8 + $0x8] sm:$0xf] %v287
    %296 = vst [vmem:[#allocation8 + $0xc] sm:$0xf] %v288
    %297 = vst [vmem:[#allocation8 + $0x10] sm:$0xf] %v289
    %298 = vst [vmem:[#allocation8 + $0x14] sm:$0xf] %v290
    %299 = vst [vmem:[#allocation8 + $0x18] sm:$0xf] %v291
    %300 = vst [vmem:[#allocation8 + $0x1c] sm:$0xf] %v292
    // Predicated region
    $region22: #{tpu_custom_call.1} parent=1 // pred_check
      _
    $region23: #{tpu_custom_call.1} parent=1 // pred_check_branch
      %302 = sbr.rel (0) target = $region25
    $region24: #{tpu_custom_call.1} parent=1 // pred_region
      %304 = vsyncadd [#allocation5], 0
      %s305 = sshll.u32 [#allocation8], 4
      %s306 = int_to_ptr.vmem [resolvable:$true] %s305
      %s307 = sshll.u32 %s3, 4
      %s308 = int_to_ptr.hbm [resolvable:$true] %s307
      %313 = dma.vmem_to_hbm [thread:$0]  %s306, 512, %s308, [#allocation5], 64, 64, 4
    $region25: #{tpu_custom_call.1} parent=1 // pred_fallthru
      _
    // Predicated region
    $region26: #{tpu_custom_call.1} parent=1 // pred_check
      _
    $region27: #{tpu_custom_call.1} parent=1 // pred_check_branch
      %315 = sbr.rel (0) target = $region29
    $region28: #{tpu_custom_call.1} parent=1 // pred_region
      %317 = dma.done [#allocation5], 512
    $region29: #{tpu_custom_call.1} parent=1 // pred_fallthru
      _
    %318 = vsyncpa [#allocation4], 1
    %319 = vsyncpa [#allocation7], 1
    %320 = vsyncpa [#allocation5], 1

</llo_original>
